<compile_context>
chip_gen: v7x
topology: tpu7x:2x2x1
jax: 0.10.0
libtpu: 0.0.40
codegen_flags: <defaults>
</compile_context>

<pallas_src>
import functools
import math

import jax
import jax.numpy as jnp
from jax.experimental import pallas as pl
from jax.experimental.pallas import tpu as pltpu


def _mha_kernel(x_ref, wqkv_ref, wo_ref, bo_ref, o_ref, *,
                seq, num_heads, head_dim, d_out):
    x = x_ref[0]                                                     # (T, d_in)

    # One fused, lane-dense QKV projection (Q columns already carry 1/sqrt(head_dim)).
    qkv = jnp.dot(x, wqkv_ref[...], preferred_element_type=jnp.float32)   # (T, 3*d_out)

    # In-kernel causal mask (triu, diagonal=1) — no (T, T) mask DMA.
    row = jax.lax.broadcasted_iota(jnp.int32, (seq, seq), 0)
    col = jax.lax.broadcasted_iota(jnp.int32, (seq, seq), 1)
    future = col > row

    # Per-head scores from static lane slices of the fused projection.
    scores = []
    values = []
    for h in range(num_heads):
        q_h = qkv[:, h * head_dim:(h + 1) * head_dim]                        # (T, hd)
        k_h = qkv[:, d_out + h * head_dim:d_out + (h + 1) * head_dim]        # (T, hd)
        v_h = qkv[:, 2 * d_out + h * head_dim:2 * d_out + (h + 1) * head_dim]
        s_h = jax.lax.dot_general(q_h, k_h, (((1,), (1,)), ((), ())),
                                  preferred_element_type=jnp.float32)        # (T, T)
        scores.append(jnp.where(future, -jnp.inf, s_h))
        values.append(v_h)

    # Softmax over the HEADS axis (torch.softmax(dim=1)) — faithful to the module,
    # including the NaNs it produces for rows containing any masked key.
    m = scores[0]
    for s_h in scores[1:]:
        m = jnp.maximum(m, s_h)
    exps = [jnp.exp(s_h - m) for s_h in scores]
    denom = exps[0]
    for e_h in exps[1:]:
        denom = denom + e_h
    inv = pl.reciprocal(denom, approx=True)          # EUP slot, off the VALU path.

    # Dropout is identity at inference (p = 0.0).

    # Per-head context, heads concatenated along lanes -> (T, d_out); the output
    # projection then does the head reduction as a single K = d_out MXU contraction.
    ctx = jnp.concatenate(
        [jnp.dot(e_h * inv, v_h, preferred_element_type=jnp.float32)
         for e_h, v_h in zip(exps, values)],
        axis=1)                                                             # (T, d_out)

    out = jnp.dot(ctx, wo_ref[...], preferred_element_type=jnp.float32) + bo_ref[...]
    o_ref[0] = out.astype(o_ref.dtype)


def multi_head_attention(x, wq, wk, wv, wo, bo, *, num_heads,
                         compute_dtype=jnp.float32):
    """x: (B, T, d_in); wq/wk/wv: (d_in, d_out); wo: (d_out, d_out); bo: (1, d_out)."""
    b, t, d_in = x.shape
    d_out = wq.shape[1]
    hd = d_out // num_heads

    # Wrapper-side (XLA) prep: fuse QKV along the output dim and fold the softmax scale
    # into W_query (scale > 0, so masking with -inf before vs after scaling is the same).
    w_qkv = jnp.concatenate([wq * (1.0 / math.sqrt(hd)), wk, wv],
                            axis=1).astype(compute_dtype)            # (d_in, 3*d_out)

    kernel = functools.partial(_mha_kernel, seq=t, num_heads=num_heads,
                               head_dim=hd, d_out=d_out)

    return pl.pallas_call(
        kernel,
        out_shape=jax.ShapeDtypeStruct((b, t, d_out), x.dtype),
        grid=(b,),                                   # one batch element per grid step
        in_specs=[
            pl.BlockSpec((1, t, d_in), lambda i: (i, 0, 0)),         # x[b]
            pl.BlockSpec((d_in, 3 * d_out), lambda i: (0, 0)),       # fused W_qkv
            pl.BlockSpec((d_out, d_out), lambda i: (0, 0)),          # out_proj weight
            pl.BlockSpec((1, d_out), lambda i: (0, 0)),              # out_proj bias
        ],
        out_specs=pl.BlockSpec((1, t, d_out), lambda i: (i, 0, 0)),
        compiler_params=pltpu.CompilerParams(
            dimension_semantics=("parallel",)),      # v7x: both TCs split the batch axis
    )(x.astype(compute_dtype), w_qkv, wo.astype(compute_dtype),
      bo.reshape(1, d_out).astype(jnp.float32))


def mha_reference(x, wq, wk, wv, wo, bo, mask, *, num_heads):
    """Pure-JAX reference mirroring the PyTorch forward exactly (incl. softmax over heads)."""
    b, T, d_in = x.shape
    d_out = wq.shape[1]
    hd = d_out // num_heads
    q = (x @ wq).reshape(b, T, num_heads, hd).transpose(0, 2, 1, 3)
    k = (x @ wk).reshape(b, T, num_heads, hd).transpose(0, 2, 1, 3)
    v = (x @ wv).reshape(b, T, num_heads, hd).transpose(0, 2, 1, 3)
    s = jnp.einsum('bhqd,bhkd->bhqk', q, k)
    s = jnp.where(mask[None, None] > 0.5, -jnp.inf, s) / math.sqrt(hd)
    m = jnp.max(s, axis=1, keepdims=True)            # softmax over heads (torch dim=1)
    e = jnp.exp(s - m)
    w = e / jnp.sum(e, axis=1, keepdims=True)
    ctx = jnp.einsum('bhqk,bhkd->bhqd', w, v).transpose(0, 2, 1, 3).reshape(b, T, d_out)
    return ctx @ wo + bo


if __name__ == "__main__":
    # Small shapes consistent with the module: d_in=32, d_out=32, context_length=8,
    # num_heads=4, dropout=0.0, qkv_bias=False.
    B, T, D_IN, D_OUT, NUM_HEADS = 2, 8, 32, 32, 4

    key = jax.random.PRNGKey(0)
    k_x, k_q, k_k, k_v, k_o, k_b = jax.random.split(key, 6)

    x = jax.random.normal(k_x, (B, T, D_IN), dtype=jnp.float32)
    # Deterministic synthetic parameters (PyTorch Linear shapes, stored transposed).
    wq = jax.random.normal(k_q, (D_IN, D_OUT), dtype=jnp.float32) * 0.1
    wk = jax.random.normal(k_k, (D_IN, D_OUT), dtype=jnp.float32) * 0.1
    wv = jax.random.normal(k_v, (D_IN, D_OUT), dtype=jnp.float32) * 0.1
    wo = jax.random.normal(k_o, (D_OUT, D_OUT), dtype=jnp.float32) * 0.1
    bo = jax.random.normal(k_b, (1, D_OUT), dtype=jnp.float32) * 0.1

    out = multi_head_attention(x, wq, wk, wv, wo, bo, num_heads=NUM_HEADS)
    out = jax.block_until_ready(out)

    # register_buffer('mask', triu(ones, diagonal=1)) — used only by the reference.
    mask = jnp.triu(jnp.ones((T, T), dtype=jnp.float32), k=1)
    ref = mha_reference(x, wq, wk, wv, wo, bo, mask, num_heads=NUM_HEADS)

    assert out.shape == (B, T, D_OUT)
    # equal_nan: softmax(dim=1) makes rows with any future key NaN, exactly like the
    # PyTorch module.  Tolerance loosened slightly vs 1e-5 because the approx EUP
    # reciprocal and the scale folded into W_q change rounding on the finite rows.
    assert bool(jnp.allclose(out, ref, rtol=2e-3, atol=2e-3, equal_nan=True))

    print("KERNEL_OK")
</pallas_src>

<mosaic_0001>
module attributes {stable_mosaic.version = 11 : i64} {
  func.func @_mha_kernel(%arg0: i32, %arg1: memref<1x8x32xf32, #tpu.memory_space<vmem>>, %arg2: memref<32x96xf32, #tpu.memory_space<vmem>>, %arg3: memref<32x32xf32, #tpu.memory_space<vmem>>, %arg4: memref<1x32xf32, #tpu.memory_space<vmem>>, %arg5: memref<1x8x32xf32, #tpu.memory_space<vmem>>) attributes {dimension_semantics = [#tpu.dimension_semantics<parallel>], iteration_bounds = array<i64: 2>, scalar_prefetch = 0 : i64, scratch_operands = 0 : i64, tpu.core_type = #tpu.core_type<tc>, window_params = [{transform_indices = @transform_0, window_bounds = array<i64: 1, 8, 32>}, {pipeline_mode = #tpu.pipeline_mode<synchronous>, transform_indices = @transform_1, window_bounds = array<i64: 32, 96>}, {pipeline_mode = #tpu.pipeline_mode<synchronous>, transform_indices = @transform_2, window_bounds = array<i64: 32, 32>}, {pipeline_mode = #tpu.pipeline_mode<synchronous>, transform_indices = @transform_3, window_bounds = array<i64: 1, 32>}, {transform_indices = @transform_4, window_bounds = array<i64: 1, 8, 32>}]} {
    %c0 = arith.constant 0 : index
    %c0_0 = arith.constant 0 : index
    %c0_1 = arith.constant 0 : index
    %0 = vector.load %arg1[%c0, %c0_0, %c0_1] : memref<1x8x32xf32, #tpu.memory_space<vmem>>, vector<1x8x32xf32>
    %1 = vector.shape_cast %0 : vector<1x8x32xf32> to vector<8x32xf32>
    %c0_2 = arith.constant 0 : index
    %c0_3 = arith.constant 0 : index
    %2 = vector.load %arg2[%c0_2, %c0_3] : memref<32x96xf32, #tpu.memory_space<vmem>>, vector<32x96xf32>
    %cst = arith.constant dense<0.000000e+00> : vector<8x96xf32>
    %3 = tpu.matmul %1, %2, %cst {dimension_numbers = #tpu.dot_dimension_numbers<[1], [0], [0], [1], [0, 0, 1, 1], [], []>} : vector<8x32xf32>, vector<32x96xf32>, vector<8x96xf32> -> vector<8x96xf32>
    %4 = tpu.iota {dimensions = array<i32: 0>} : vector<8x8xi32>
    %5 = tpu.iota {dimensions = array<i32: 1>} : vector<8x8xi32>
    %6 = arith.cmpi sgt, %5, %4 : vector<8x8xi32>
    %7 = vector.extract_strided_slice %3 {offsets = [0, 0], sizes = [8, 8], strides = [1, 1]} : vector<8x96xf32> to vector<8x8xf32>
    %8 = vector.extract_strided_slice %3 {offsets = [0, 32], sizes = [8, 8], strides = [1, 1]} : vector<8x96xf32> to vector<8x8xf32>
    %9 = vector.extract_strided_slice %3 {offsets = [0, 64], sizes = [8, 8], strides = [1, 1]} : vector<8x96xf32> to vector<8x8xf32>
    %cst_4 = arith.constant dense<0.000000e+00> : vector<8x8xf32>
    %10 = tpu.matmul %7, %8, %cst_4 {dimension_numbers = #tpu.dot_dimension_numbers<[1], [1], [0], [0], [0, 0, 1, 0], [], []>} : vector<8x8xf32>, vector<8x8xf32>, vector<8x8xf32> -> vector<8x8xf32>
    %cst_5 = arith.constant 0xFF800000 : f32
    %11 = vector.broadcast %cst_5 : f32 to vector<8x8xf32>
    %12 = arith.select %6, %11, %10 : vector<8x8xi1>, vector<8x8xf32>
    %13 = vector.extract_strided_slice %3 {offsets = [0, 8], sizes = [8, 8], strides = [1, 1]} : vector<8x96xf32> to vector<8x8xf32>
    %14 = vector.extract_strided_slice %3 {offsets = [0, 40], sizes = [8, 8], strides = [1, 1]} : vector<8x96xf32> to vector<8x8xf32>
    %15 = vector.extract_strided_slice %3 {offsets = [0, 72], sizes = [8, 8], strides = [1, 1]} : vector<8x96xf32> to vector<8x8xf32>
    %cst_6 = arith.constant dense<0.000000e+00> : vector<8x8xf32>
    %16 = tpu.matmul %13, %14, %cst_6 {dimension_numbers = #tpu.dot_dimension_numbers<[1], [1], [0], [0], [0, 0, 1, 0], [], []>} : vector<8x8xf32>, vector<8x8xf32>, vector<8x8xf32> -> vector<8x8xf32>
    %cst_7 = arith.constant 0xFF800000 : f32
    %17 = vector.broadcast %cst_7 : f32 to vector<8x8xf32>
    %18 = arith.select %6, %17, %16 : vector<8x8xi1>, vector<8x8xf32>
    %19 = vector.extract_strided_slice %3 {offsets = [0, 16], sizes = [8, 8], strides = [1, 1]} : vector<8x96xf32> to vector<8x8xf32>
    %20 = vector.extract_strided_slice %3 {offsets = [0, 48], sizes = [8, 8], strides = [1, 1]} : vector<8x96xf32> to vector<8x8xf32>
    %21 = vector.extract_strided_slice %3 {offsets = [0, 80], sizes = [8, 8], strides = [1, 1]} : vector<8x96xf32> to vector<8x8xf32>
    %cst_8 = arith.constant dense<0.000000e+00> : vector<8x8xf32>
    %22 = tpu.matmul %19, %20, %cst_8 {dimension_numbers = #tpu.dot_dimension_numbers<[1], [1], [0], [0], [0, 0, 1, 0], [], []>} : vector<8x8xf32>, vector<8x8xf32>, vector<8x8xf32> -> vector<8x8xf32>
    %cst_9 = arith.constant 0xFF800000 : f32
    %23 = vector.broadcast %cst_9 : f32 to vector<8x8xf32>
    %24 = arith.select %6, %23, %22 : vector<8x8xi1>, vector<8x8xf32>
    %25 = vector.extract_strided_slice %3 {offsets = [0, 24], sizes = [8, 8], strides = [1, 1]} : vector<8x96xf32> to vector<8x8xf32>
    %26 = vector.extract_strided_slice %3 {offsets = [0, 56], sizes = [8, 8], strides = [1, 1]} : vector<8x96xf32> to vector<8x8xf32>
    %27 = vector.extract_strided_slice %3 {offsets = [0, 88], sizes = [8, 8], strides = [1, 1]} : vector<8x96xf32> to vector<8x8xf32>
    %cst_10 = arith.constant dense<0.000000e+00> : vector<8x8xf32>
    %28 = tpu.matmul %25, %26, %cst_10 {dimension_numbers = #tpu.dot_dimension_numbers<[1], [1], [0], [0], [0, 0, 1, 0], [], []>} : vector<8x8xf32>, vector<8x8xf32>, vector<8x8xf32> -> vector<8x8xf32>
    %cst_11 = arith.constant 0xFF800000 : f32
    %29 = vector.broadcast %cst_11 : f32 to vector<8x8xf32>
    %30 = arith.select %6, %29, %28 : vector<8x8xi1>, vector<8x8xf32>
    %31 = arith.maximumf %12, %18 : vector<8x8xf32>
    %32 = arith.maximumf %31, %24 : vector<8x8xf32>
    %33 = arith.maximumf %32, %30 : vector<8x8xf32>
    %34 = arith.subf %12, %33 : vector<8x8xf32>
    %35 = math.exp %34 : vector<8x8xf32>
    %36 = arith.subf %18, %33 : vector<8x8xf32>
    %37 = math.exp %36 : vector<8x8xf32>
    %38 = arith.subf %24, %33 : vector<8x8xf32>
    %39 = math.exp %38 : vector<8x8xf32>
    %40 = arith.subf %30, %33 : vector<8x8xf32>
    %41 = math.exp %40 : vector<8x8xf32>
    %42 = arith.addf %35, %37 : vector<8x8xf32>
    %43 = arith.addf %42, %39 : vector<8x8xf32>
    %44 = arith.addf %43, %41 : vector<8x8xf32>
    %45 = tpu.reciprocal %44 {approx = true} : vector<8x8xf32> -> vector<8x8xf32>
    %46 = arith.mulf %35, %45 : vector<8x8xf32>
    %cst_12 = arith.constant dense<0.000000e+00> : vector<8x8xf32>
    %47 = tpu.matmul %46, %9, %cst_12 {dimension_numbers = #tpu.dot_dimension_numbers<[1], [0], [0], [1], [0, 0, 1, 1], [], []>} : vector<8x8xf32>, vector<8x8xf32>, vector<8x8xf32> -> vector<8x8xf32>
    %48 = arith.mulf %37, %45 : vector<8x8xf32>
    %cst_13 = arith.constant dense<0.000000e+00> : vector<8x8xf32>
    %49 = tpu.matmul %48, %15, %cst_13 {dimension_numbers = #tpu.dot_dimension_numbers<[1], [0], [0], [1], [0, 0, 1, 1], [], []>} : vector<8x8xf32>, vector<8x8xf32>, vector<8x8xf32> -> vector<8x8xf32>
    %50 = arith.mulf %39, %45 : vector<8x8xf32>
    %cst_14 = arith.constant dense<0.000000e+00> : vector<8x8xf32>
    %51 = tpu.matmul %50, %21, %cst_14 {dimension_numbers = #tpu.dot_dimension_numbers<[1], [0], [0], [1], [0, 0, 1, 1], [], []>} : vector<8x8xf32>, vector<8x8xf32>, vector<8x8xf32> -> vector<8x8xf32>
    %52 = arith.mulf %41, %45 : vector<8x8xf32>
    %cst_15 = arith.constant dense<0.000000e+00> : vector<8x8xf32>
    %53 = tpu.matmul %52, %27, %cst_15 {dimension_numbers = #tpu.dot_dimension_numbers<[1], [0], [0], [1], [0, 0, 1, 1], [], []>} : vector<8x8xf32>, vector<8x8xf32>, vector<8x8xf32> -> vector<8x8xf32>
    %54 = tpu.concatenate %47, %49, %51, %53 in 1 : vector<8x8xf32>, vector<8x8xf32>, vector<8x8xf32>, vector<8x8xf32> -> vector<8x32xf32>
    %c0_16 = arith.constant 0 : index
    %c0_17 = arith.constant 0 : index
    %55 = vector.load %arg3[%c0_16, %c0_17] : memref<32x32xf32, #tpu.memory_space<vmem>>, vector<32x32xf32>
    %cst_18 = arith.constant dense<0.000000e+00> : vector<8x32xf32>
    %56 = tpu.matmul %54, %55, %cst_18 {dimension_numbers = #tpu.dot_dimension_numbers<[1], [0], [0], [1], [0, 0, 1, 1], [], []>} : vector<8x32xf32>, vector<32x32xf32>, vector<8x32xf32> -> vector<8x32xf32>
    %c0_19 = arith.constant 0 : index
    %c0_20 = arith.constant 0 : index
    %57 = vector.load %arg4[%c0_19, %c0_20] : memref<1x32xf32, #tpu.memory_space<vmem>>, vector<1x32xf32>
    %58 = vector.broadcast %57 : vector<1x32xf32> to vector<8x32xf32>
    %59 = arith.addf %56, %58 : vector<8x32xf32>
    %c0_21 = arith.constant 0 : index
    %c0_22 = arith.constant 0 : index
    %c0_23 = arith.constant 0 : index
    %60 = vector.load %arg5[%c0_21, %c0_22, %c0_23] : memref<1x8x32xf32, #tpu.memory_space<vmem>>, vector<1x8x32xf32>
    %61 = vector.shape_cast %60 : vector<1x8x32xf32> to vector<8x32xf32>
    %62 = vector.shape_cast %59 : vector<8x32xf32> to vector<1x8x32xf32>
    tpu.vector_store %arg5[%c0_21, %c0_22, %c0_23], %62 {strides = array<i32>} : memref<1x8x32xf32, #tpu.memory_space<vmem>>, vector<1x8x32xf32>,
    return
  }
  func.func @transform_0(%arg0: i32) -> (i32, i32, i32) {
    %c0_i32 = arith.constant 0 : i32
    %c0_i32_0 = arith.constant 0 : i32
    %c0_i32_1 = arith.constant 0 : i32
    return %arg0, %c0_i32, %c0_i32_0 : i32, i32, i32
  }
  func.func @transform_1(%arg0: i32) -> (i32, i32) {
    %c0_i32 = arith.constant 0 : i32
    %c0_i32_0 = arith.constant 0 : i32
    %c0_i32_1 = arith.constant 0 : i32
    return %c0_i32, %c0_i32_0 : i32, i32
  }
  func.func @transform_2(%arg0: i32) -> (i32, i32) {
    %c0_i32 = arith.constant 0 : i32
    %c0_i32_0 = arith.constant 0 : i32
    %c0_i32_1 = arith.constant 0 : i32
    return %c0_i32, %c0_i32_0 : i32, i32
  }
  func.func @transform_3(%arg0: i32) -> (i32, i32) {
    %c0_i32 = arith.constant 0 : i32
    %c0_i32_0 = arith.constant 0 : i32
    %c0_i32_1 = arith.constant 0 : i32
    return %c0_i32, %c0_i32_0 : i32, i32
  }
  func.func @transform_4(%arg0: i32) -> (i32, i32, i32) {
    %c0_i32 = arith.constant 0 : i32
    %c0_i32_0 = arith.constant 0 : i32
    %c0_i32_1 = arith.constant 0 : i32
    return %arg0, %c0_i32, %c0_i32_0 : i32, i32, i32
  }
}

</mosaic_0001>

<llo_original>
// kernel: tpu_custom_call.1
$region0: #{tpu_custom_call.1}
  #allocation0 [shape = 'u32[]', space=smem, size = 0x4, offset = 0x4, fixed_abs, tag = 'smem constant byte address 0x4 - core index']
  #allocation1 [shape = 'u32[144,128]{1,0:T(1,128)}', space=vmem, size = 0x12000, scoped, tag = 'internal scratch']
  %s0 = inlined_call_operand.hbm [shape: f32[2,8,32], index: 0, kind: input, shape index: {}]
  %s1 = inlined_call_operand.hbm [shape: f32[32,96], index: 1, kind: input, shape index: {}]
  %s2 = inlined_call_operand.hbm [shape: f32[32,32], index: 2, kind: input, shape index: {}]
  %s3 = inlined_call_operand.vmem [shape: f32[1,32], index: 3, kind: input, shape index: {}]
  %s4 = inlined_call_operand.hbm [shape: f32[2,8,32], index: 4, kind: output, shape index: {}]
  %s5 = sld [smem:[#allocation0]]
  $region61: #{tpu_custom_call.1} parent=0
    _
  %s7 = ssub.s32 1, %s5
  %s8 = scalar_select 0, %s7, %s5
  $region1: #{tpu_custom_call.1} parent=0
    #allocation2 [shape = 'u8[8192]{0}', space=vmem, size = 0x2000, scoped, tag = 'input window, operand 0']
    #allocation3 [shape = 's32[2]{0}', space=sflag, size = 0x8, scoped, tag = 'scoped memory for tpu_custom_call.1']
    #allocation4 [shape = 's32[2]{0}', space=sflag, size = 0x8, scoped, tag = 'scoped memory for tpu_custom_call.1']
    #allocation5 [shape = 'u8[16384]{0}', space=vmem, size = 0x4000, scoped, tag = 'input window, operand 1, single buffered']
    #allocation6 [shape = 's32[1]{0}', space=sflag, size = 0x4, scoped, tag = 'scoped memory for tpu_custom_call.1']
    #allocation7 [shape = 'u8[16384]{0}', space=vmem, size = 0x4000, scoped, tag = 'input window, operand 2, single buffered']
    #allocation8 [shape = 'u8[8192]{0}', space=vmem, size = 0x2000, scoped, tag = 'output window, operand 0']
    %9 = vsyncpa [#allocation3], 0
    %s10 = scalar_lea.sflag [#allocation3], 1
    %11 = vsyncpa %s10, 0
    %12 = vsyncpa [#allocation6], 0
    %13 = vsyncpa [#allocation4], 0
    %s14 = scalar_lea.sflag [#allocation4], 1
    %15 = vsyncpa %s14, 0
    loop: start=0, step=1, limit=4
    $region2: #{tpu_custom_call.1} parent=1 // loop_pre_header
      _
    $region3: #{tpu_custom_call.1} parent=1 // loop_header
      %s17 = sphi 0, %s21
      %p18 = scmp.ge.s32.totalorder %s17, 4
      %s27 = sphi 0, %s29
      %s30 = sphi 0, %s27
      %s31 = sphi 0, %s30
      %s47 = sphi 0, %s31
      %s51 = sphi 0, %s51
      %s53 = sphi 0, %s51
      %s54 = sphi 0, %s53
      %s68 = sphi 0, %s54
      %s72 = sphi 0, %s72
      %s74 = sphi 0, %s72
      %s75 = sphi 0, %s74
      %s89 = sphi 0, %s75
      %s93 = sphi 0, %s93
      %s95 = sphi 0, %s93
      %s96 = sphi 0, %s95
      %s110 = sphi 0, %s96
      %s116 = sphi 0, %s118
      %s119 = sphi 0, %s116
      %s120 = sphi 0, %s119
      %s136 = sphi 0, %s120
    $region4: #{tpu_custom_call.1} parent=1 // loop_header_branch
      %20 = sbr.rel (%p18) target = $region8
    $region5: #{tpu_custom_call.1} parent=1 // loop_body
      %s22 = ssub.s32 %s17, 1
      %s23 = ssub.s32 %s17, 2
      %s24 = sadd.s32 %s17, 1
      %s25 = ssub.s32 %s17, %s24
      %p26 = scmp.eq.s32.totalorder %s25, 0
      %s28 = sadd.s32 %s27, 1
      %s29 = scalar_select %p26, %s27, %s28
      %p32 = pneg %p26
      %p33 = scmp.eq.s32.totalorder %s17, 1
      %p34 = por %p32, %p33
      %p35 = scmp.ne.s32.totalorder %s27, %s30
      %p36 = scmp.eq.s32.totalorder %s17, 0
      %p37 = por %p35, %p36
      %p38 = scmp.ne.s32.totalorder %s27, %s30
      %p39 = scmp.eq.s32.totalorder %s22, 1
      %p40 = por %p38, %p39
      %p41 = scmp.ne.s32.totalorder %s30, %s31
      %p42 = scmp.eq.s32.totalorder %s22, 0
      %p43 = por %p41, %p42
      %p44 = scmp.ne.s32.totalorder %s30, %s31
      %p45 = scmp.eq.s32.totalorder %s23, 1
      %p46 = por %p44, %p45
      %p48 = scmp.ne.s32.totalorder %s31, %s47
      %p49 = scmp.eq.s32.totalorder %s23, 0
      %p50 = por %p48, %p49
      %s52 = sadd.s32 %s51, 1
      %p55 = scmp.eq.s32.totalorder %s17, 1
      %p56 = scmp.ne.s32.totalorder %s51, %s53
      %p57 = scmp.eq.s32.totalorder %s17, 0
      %p58 = por %p56, %p57
      %p59 = scmp.ne.s32.totalorder %s51, %s53
      %p60 = scmp.eq.s32.totalorder %s22, 1
      %p61 = por %p59, %p60
      %p62 = scmp.ne.s32.totalorder %s53, %s54
      %p63 = scmp.eq.s32.totalorder %s22, 0
      %p64 = por %p62, %p63
      %p65 = scmp.ne.s32.totalorder %s53, %s54
      %p66 = scmp.eq.s32.totalorder %s23, 1
      %p67 = por %p65, %p66
      %p69 = scmp.ne.s32.totalorder %s54, %s68
      %p70 = scmp.eq.s32.totalorder %s23, 0
      %p71 = por %p69, %p70
      %s73 = sadd.s32 %s72, 1
      %p76 = scmp.eq.s32.totalorder %s17, 1
      %p77 = scmp.ne.s32.totalorder %s72, %s74
      %p78 = scmp.eq.s32.totalorder %s17, 0
      %p79 = por %p77, %p78
      %p80 = scmp.ne.s32.totalorder %s72, %s74
      %p81 = scmp.eq.s32.totalorder %s22, 1
      %p82 = por %p80, %p81
      %p83 = scmp.ne.s32.totalorder %s74, %s75
      %p84 = scmp.eq.s32.totalorder %s22, 0
      %p85 = por %p83, %p84
      %p86 = scmp.ne.s32.totalorder %s74, %s75
      %p87 = scmp.eq.s32.totalorder %s23, 1
      %p88 = por %p86, %p87
      %p90 = scmp.ne.s32.totalorder %s75, %s89
      %p91 = scmp.eq.s32.totalorder %s23, 0
      %p92 = por %p90, %p91
      %s94 = sadd.s32 %s93, 1
      %p97 = scmp.eq.s32.totalorder %s17, 1
      %p98 = scmp.ne.s32.totalorder %s93, %s95
      %p99 = scmp.eq.s32.totalorder %s17, 0
      %p100 = por %p98, %p99
      %p101 = scmp.ne.s32.totalorder %s93, %s95
      %p102 = scmp.eq.s32.totalorder %s22, 1
      %p103 = por %p101, %p102
      %p104 = scmp.ne.s32.totalorder %s95, %s96
      %p105 = scmp.eq.s32.totalorder %s22, 0
      %p106 = por %p104, %p105
      %p107 = scmp.ne.s32.totalorder %s95, %s96
      %p108 = scmp.eq.s32.totalorder %s23, 1
      %p109 = por %p107, %p108
      %p111 = scmp.ne.s32.totalorder %s96, %s110
      %p112 = scmp.eq.s32.totalorder %s23, 0
      %p113 = por %p111, %p112
      %s114 = ssub.s32 %s17, %s24
      %p115 = scmp.eq.s32.totalorder %s114, 0
      %s117 = sadd.s32 %s116, 1
      %s118 = scalar_select %p115, %s116, %s117
      %p121 = pneg %p115
      %p122 = scmp.eq.s32.totalorder %s17, 1
      %p123 = por %p121, %p122
      %p124 = scmp.ne.s32.totalorder %s116, %s119
      %p125 = scmp.eq.s32.totalorder %s17, 0
      %p126 = por %p124, %p125
      %p127 = scmp.ne.s32.totalorder %s116, %s119
      %p128 = scmp.eq.s32.totalorder %s22, 1
      %p129 = por %p127, %p128
      %p130 = scmp.ne.s32.totalorder %s119, %s120
      %p131 = scmp.eq.s32.totalorder %s22, 0
      %p132 = por %p130, %p131
      %p133 = scmp.ne.s32.totalorder %s119, %s120
      %p134 = scmp.eq.s32.totalorder %s23, 1
      %p135 = por %p133, %p134
      %p137 = scmp.ne.s32.totalorder %s120, %s136
      %p138 = scmp.eq.s32.totalorder %s23, 0
      %p139 = por %p137, %p138
      %p140 = scmp.le.s32.totalorder 1, %s17
      %p141 = scmp.lt.s32.totalorder %s17, 3
      %p142 = pnand %p140, %p141
      %p143 = pneg %p142
      // Predicated region
      $region9: #{tpu_custom_call.1} parent=5 // pred_check
        _
      $region10: #{tpu_custom_call.1} parent=5 // pred_check_branch
        %145 = sbr.rel (%p142) target = $region12
      $region11: #{tpu_custom_call.1} parent=5 // pred_region
        %s146 = ssub.s32 %s17, 1
        // Predicated region
        $region13: #{tpu_custom_call.1} parent=11 // pred_check
          %p147 = pneg %p64
        $region14: #{tpu_custom_call.1} parent=11 // pred_check_branch
          %149 = sbr.rel (%p147) target = $region16
        $region15: #{tpu_custom_call.1} parent=11 // pred_region
          %s151 = ssub.s32 512, 512
          %152 = vsyncadd [#allocation6], %s151
          %s153 = sshll.u32 [#allocation5], 4
          %s154 = int_to_ptr.vmem [resolvable:$true] %s153
          %159 = dma.hbm_to_vmem [thread:$0]  %s1, 512, %s154, [#allocation6], 128, 128, 8
        $region16: #{tpu_custom_call.1} parent=11 // pred_fallthru
          _
        // Predicated region
        $region17: #{tpu_custom_call.1} parent=11 // pred_check
          %p160 = pneg %p85
        $region18: #{tpu_custom_call.1} parent=11 // pred_check_branch
          %162 = sbr.rel (%p160) target = $region20
        $region19: #{tpu_custom_call.1} parent=11 // pred_region
          %s164 = ssub.s32 512, 512
          %165 = vsyncadd [#allocation6], %s164
          %s166 = sshll.u32 [#allocation7], 4
          %s167 = int_to_ptr.vmem [resolvable:$true] %s166
          %172 = dma.hbm_to_vmem [thread:$0]  %s2, 512, %s167, [#allocation6], 128, 128, 8
        $region20: #{tpu_custom_call.1} parent=11 // pred_fallthru
          _
        // Predicated region
        $region21: #{tpu_custom_call.1} parent=11 // pred_check
          %p173 = pneg %p106
        $region22: #{tpu_custom_call.1} parent=11 // pred_check_branch
          %175 = sbr.rel (%p173) target = $region24
        $region23: #{tpu_custom_call.1} parent=11 // pred_region
          _
        $region24: #{tpu_custom_call.1} parent=11 // pred_fallthru
          _
      $region12: #{tpu_custom_call.1} parent=5 // pred_fallthru
        _
      %p176 = scmp.lt.s32.totalorder %s17, 2
      // Predicated region
      $region25: #{tpu_custom_call.1} parent=5 // pred_check
        %p177 = pneg %p176
      $region26: #{tpu_custom_call.1} parent=5 // pred_check_branch
        %179 = sbr.rel (%p177) target = $region28
      $region27: #{tpu_custom_call.1} parent=5 // pred_region
        // Predicated region
        $region29: #{tpu_custom_call.1} parent=27 // pred_check
          %p180 = pneg %p37
        $region30: #{tpu_custom_call.1} parent=27 // pred_check_branch
          %182 = sbr.rel (%p180) target = $region32
        $region31: #{tpu_custom_call.1} parent=27 // pred_region
          %s183 = sand.u32 %s27, 1
          %s184 = scalar_lea.sflag [#allocation3], %s183
          %s185 = sand.u32 %s27, 1
          %s186 = smul.addr %s185, 8
          %s187 = scalar_lea.vmem [#allocation2], %s186
          %s189 = ssub.s32 128, 128
          %190 = vsyncadd %s184, %s189
          %s191 = smul.addr %s17, 128
          %s192 = scalar_lea.hbm %s0, %s191
          %s194 = sshll.u32 %s187, 4
          %s195 = int_to_ptr.vmem [resolvable:$true] %s194
          %197 = dma.hbm_to_vmem [thread:$0]  %s192, 128, %s195, %s184
        $region32: #{tpu_custom_call.1} parent=27 // pred_fallthru
          _
      $region28: #{tpu_custom_call.1} parent=5 // pred_fallthru
        _
      %p198 = scmp.le.s32.totalorder 1, %s17
      %p199 = scmp.lt.s32.totalorder %s17, 3
      %p200 = pnand %p198, %p199
      %p201 = pneg %p200
      // Predicated region
      $region33: #{tpu_custom_call.1} parent=5 // pred_check
        _
      $region34: #{tpu_custom_call.1} parent=5 // pred_check_branch
        %203 = sbr.rel (%p200) target = $region36
      $region35: #{tpu_custom_call.1} parent=5 // pred_region
        %s204 = ssub.s32 %s17, 1
        %s205 = sand.u32 %s30, 1
        %s206 = scalar_lea.sflag [#allocation3], %s205
        %s207 = sand.u32 %s30, 1
        %s208 = smul.addr %s207, 8
        %s209 = scalar_lea.vmem [#allocation2], %s208
        // Predicated region
        $region37: #{tpu_custom_call.1} parent=35 // pred_check
          %p210 = pneg %p43
        $region38: #{tpu_custom_call.1} parent=35 // pred_check_branch
          %212 = sbr.rel (%p210) target = $region40
        $region39: #{tpu_custom_call.1} parent=35 // pred_region
          %213 = dma.done %s206, 128
        $region40: #{tpu_custom_call.1} parent=35 // pred_fallthru
          _
        // Predicated region
        $region41: #{tpu_custom_call.1} parent=35 // pred_check
          %p214 = pneg %p64
        $region42: #{tpu_custom_call.1} parent=35 // pred_check_branch
          %216 = sbr.rel (%p214) target = $region44
        $region43: #{tpu_custom_call.1} parent=35 // pred_region
          %217 = dma.done [#allocation6], 512
        $region44: #{tpu_custom_call.1} parent=35 // pred_fallthru
          _
        // Predicated region
        $region45: #{tpu_custom_call.1} parent=35 // pred_check
          %p218 = pneg %p85
        $region46: #{tpu_custom_call.1} parent=35 // pred_check_branch
          %220 = sbr.rel (%p218) target = $region48
        $region47: #{tpu_custom_call.1} parent=35 // pred_region
          %221 = dma.done [#allocation6], 512
        $region48: #{tpu_custom_call.1} parent=35 // pred_fallthru
          _
        %s222 = sand.u32 %s30, 1
        %s223 = scalar_lea.sflag [#allocation3], %s222
        %s224 = sand.u32 %s30, 1
        %s225 = smul.addr %s224, 8
        %s226 = scalar_lea.vmem [#allocation2], %s225
        %p227 = pneg %p43
        %p228 = pneg %p40
        %p229 = pneg %p64
        %p230 = pneg %p61
        %p231 = pneg %p85
        %p232 = pneg %p82
        %p233 = pneg %p106
        %p234 = pneg %p103
        %p235 = pneg %p132
        %p236 = pneg %p129
        %s237 = sand.u32 %s119, 1
        %s238 = scalar_lea.sflag [#allocation4], %s237
        %s239 = sand.u32 %s119, 1
        %s240 = smul.addr %s239, 8
        %s241 = scalar_lea.vmem [#allocation8], %s240
        %v242 = vld [vmem:[%s209] sm:$0xff]
        %v243 = vld [vmem:[#allocation5] sm:$0xff]
        %v244 = vld [vmem:[#allocation5 + $0x8] sm:$0xff]
        %v245 = vld [vmem:[#allocation5 + $0x10] sm:$0xff]
        %v246 = vld [vmem:[#allocation5 + $0x18] sm:$0xff]
        %vm247 = vcmask 261120
        %v249 = vsel %vm247, %v242, 0
        %251 = vmatprep.subr.mxu0 0.0
        %252 = vmatpush1.msra.mxu0 %v243
        %253 = vmatprep.subr.mxu0 0.0
        %254 = vmatpush1.msra.mxu0 %v244
        %255 = vmatprep.subr.mxu0 0.0
        %256 = vmatpush1.msra.mxu0 %v245
        %257 = vmatprep.subr.mxu0 0.0
        %258 = vmatpush1.msra.mxu0 %v246
        %259 = vmatprep.subr.mxu0 0.0
        %260 = vmatpush1.msra.mxu0 0.0
        %261 = vmatprep.subr.mxu0 0.0
        %262 = vmatpush1.msra.mxu0 0.0
        %263 = vmatprep.subr.mxu0 0.0
        %264 = vmatpush1.msra.mxu0 0.0
        %265 = vmatprep.subr.mxu0 0.0
        %266 = vmatpush1.msra.mxu0 0.0
        %267 = vmatprep.subr.mxu0 0.0
        %268 = vmatpush1.msra.mxu0 0.0
        %269 = vmatprep.subr.mxu0 0.0
        %270 = vmatpush1.msra.mxu0 0.0
        %271 = vmatprep.subr.mxu0 0.0
        %272 = vmatpush1.msra.mxu0 0.0
        %273 = vmatprep.subr.mxu0 0.0
        %274 = vmatpush1.msra.mxu0 0.0
        %275 = vmatprep.subr.mxu0 0.0
        %276 = vmatpush1.msra.mxu0 0.0
        %277 = vmatprep.subr.mxu0 0.0
        %278 = vmatpush1.msra.mxu0 0.0
        %279 = vmatprep.subr.mxu0 0.0
        %280 = vmatpush1.msra.mxu0 0.0
        %281 = vmatprep.subr.mxu0 0.0
        %282 = vmatpush1.msra.mxu0 0.0
        %283 = vmatprep.subr.mxu0 0.0
        %284 = vmatpush1.msra.mxu0 0.0
        %285 = vmatprep.subr.mxu0 0.0
        %286 = vmatpush1.msra.mxu0 0.0
        %287 = vmatprep.subr.mxu0 0.0
        %288 = vmatpush1.msra.mxu0 0.0
        %289 = vmatprep.subr.mxu0 0.0
        %290 = vmatpush1.msra.mxu0 0.0
        %291 = vmatprep.subr.mxu0 0.0
        %292 = vmatpush1.msra.mxu0 0.0
        %293 = vmatprep.subr.mxu0 0.0
        %294 = vmatpush1.msra.mxu0 0.0
        %295 = vmatprep.subr.mxu0 0.0
        %296 = vmatpush1.msra.mxu0 0.0
        %297 = vmatprep.subr.mxu0 0.0
        %298 = vmatpush1.msra.mxu0 0.0
        %299 = vmatprep.subr.mxu0 0.0
        %300 = vmatpush1.msra.mxu0 0.0
        %301 = vmatprep.subr.mxu0 0.0
        %302 = vmatpush1.msra.mxu0 0.0
        %303 = vmatprep.subr.mxu0 0.0
        %304 = vmatpush1.msra.mxu0 0.0
        %305 = vmatprep.subr.mxu0 0.0
        %306 = vmatpush1.msra.mxu0 0.0
        %307 = vmatprep.subr.mxu0 0.0
        %308 = vmatpush1.msra.mxu0 0.0
        %309 = vmatprep.subr.mxu0 0.0
        %310 = vmatpush1.msra.mxu0 0.0
        %311 = vmatprep.subr.mxu0 0.0
        %312 = vmatpush1.msra.mxu0 0.0
        %313 = vmatprep.subr.mxu0 0.0
        %314 = vmatpush1.msra.mxu0 0.0
        %315 = vmatprep.mubr.f32.mxu0 0.0
        %316 = vmatmul.mubr.f32.gmra.mrb[0].mxu0 %v249
        %v317 = vpop.f32.mrb[0].mxu0
        %v318 = vadd.f32 0.0, %v317
        %v319 = vpop.f32.mrb[0].mxu0
        %320 = vdwg.mxu0
        %v321 = vlaneseq
        %v322 = vshrl.u32 %v321, 7
        %v323 = vlaneseq
        %v324 = vand.u32 %v323, 127
        %vm325 = vcmp.gt.s32.totalorder %v324, %v322
        %327 = vrot.lane.b32.xlu0 %v318, 96
        %v328 = vpop.permute.xlu0 %327
        %vm329 = vcmask 64512
        %v330 = vsel %vm329, %v318, 0
        %v332 = vsel %vm329, %v328, 0
        %334 = vmatprep.subr.mxu0 0.0
        %335 = vmatpush1.xpose.msra.mxu0 %v332
        %336 = vmatprep.subr.mxu0 0.0
        %337 = vmatpush1.xpose.msra.mxu0 0.0
        %338 = vmatprep.subr.mxu0 0.0
        %339 = vmatpush1.xpose.msra.mxu0 0.0
        %340 = vmatprep.subr.mxu0 0.0
        %341 = vmatpush1.xpose.msra.mxu0 0.0
        %342 = vmatprep.subr.mxu0 0.0
        %343 = vmatpush1.xpose.msra.mxu0 0.0
        %344 = vmatprep.subr.mxu0 0.0
        %345 = vmatpush1.xpose.msra.mxu0 0.0
        %346 = vmatprep.subr.mxu0 0.0
        %347 = vmatpush1.xpose.msra.mxu0 0.0
        %348 = vmatprep.subr.mxu0 0.0
        %349 = vmatpush1.xpose.msra.mxu0 0.0
        %350 = vmatprep.subr.mxu0 0.0
        %351 = vmatpush1.xpose.msra.mxu0 0.0
        %352 = vmatprep.subr.mxu0 0.0
        %353 = vmatpush1.xpose.msra.mxu0 0.0
        %354 = vmatprep.subr.mxu0 0.0
        %355 = vmatpush1.xpose.msra.mxu0 0.0
        %356 = vmatprep.subr.mxu0 0.0
        %357 = vmatpush1.xpose.msra.mxu0 0.0
        %358 = vmatprep.subr.mxu0 0.0
        %359 = vmatpush1.xpose.msra.mxu0 0.0
        %360 = vmatprep.subr.mxu0 0.0
        %361 = vmatpush1.xpose.msra.mxu0 0.0
        %362 = vmatprep.subr.mxu0 0.0
        %363 = vmatpush1.xpose.msra.mxu0 0.0
        %364 = vmatprep.subr.mxu0 0.0
        %365 = vmatpush1.xpose.msra.mxu0 0.0
        %366 = vmatprep.subr.mxu0 0.0
        %367 = vmatpush1.xpose.msra.mxu0 0.0
        %368 = vmatprep.subr.mxu0 0.0
        %369 = vmatpush1.xpose.msra.mxu0 0.0
        %370 = vmatprep.subr.mxu0 0.0
        %371 = vmatpush1.xpose.msra.mxu0 0.0
        %372 = vmatprep.subr.mxu0 0.0
        %373 = vmatpush1.xpose.msra.mxu0 0.0
        %374 = vmatprep.subr.mxu0 0.0
        %375 = vmatpush1.xpose.msra.mxu0 0.0
        %376 = vmatprep.subr.mxu0 0.0
        %377 = vmatpush1.xpose.msra.mxu0 0.0
        %378 = vmatprep.subr.mxu0 0.0
        %379 = vmatpush1.xpose.msra.mxu0 0.0
        %380 = vmatprep.subr.mxu0 0.0
        %381 = vmatpush1.xpose.msra.mxu0 0.0
        %382 = vmatprep.subr.mxu0 0.0
        %383 = vmatpush1.xpose.msra.mxu0 0.0
        %384 = vmatprep.subr.mxu0 0.0
        %385 = vmatpush1.xpose.msra.mxu0 0.0
        %386 = vmatprep.subr.mxu0 0.0
        %387 = vmatpush1.xpose.msra.mxu0 0.0
        %388 = vmatprep.subr.mxu0 0.0
        %389 = vmatpush1.xpose.msra.mxu0 0.0
        %390 = vmatprep.subr.mxu0 0.0
        %391 = vmatpush1.xpose.msra.mxu0 0.0
        %392 = vmatprep.subr.mxu0 0.0
        %393 = vmatpush1.xpose.msra.mxu0 0.0
        %394 = vmatprep.subr.mxu0 0.0
        %395 = vmatpush1.xpose.msra.mxu0 0.0
        %396 = vmatprep.subr.mxu0 0.0
        %397 = vmatpush1.xpose.msra.mxu0 0.0
        %398 = vmatprep.mubr.f32.mxu0 0.0
        %399 = vmatmul.mubr.f32.gmra.mrb[0].mxu0 %v330
        %v400 = vpop.f32.mrb[0].mxu0
        %v401 = vadd.f32 0.0, %v400
        %v402 = vpop.f32.mrb[0].mxu0
        %403 = vdwg.mxu0
        %v404 = vsel %vm325, -inf, %v401
        %405 = vrot.lane.b32.xlu0 %v318, 120
        %v406 = vpop.permute.xlu0 %405
        %407 = vrot.lane.b32.xlu0 %v318, 88
        %v408 = vpop.permute.xlu0 %407
        %v409 = vsel %vm329, %v406, 0
        %v411 = vsel %vm329, %v408, 0
        %413 = vmatprep.subr.mxu0 0.0
        %414 = vmatpush1.xpose.msra.mxu0 %v411
        %415 = vmatprep.subr.mxu0 0.0
        %416 = vmatpush1.xpose.msra.mxu0 0.0
        %417 = vmatprep.subr.mxu0 0.0
        %418 = vmatpush1.xpose.msra.mxu0 0.0
        %419 = vmatprep.subr.mxu0 0.0
        %420 = vmatpush1.xpose.msra.mxu0 0.0
        %421 = vmatprep.subr.mxu0 0.0
        %422 = vmatpush1.xpose.msra.mxu0 0.0
        %423 = vmatprep.subr.mxu0 0.0
        %424 = vmatpush1.xpose.msra.mxu0 0.0
        %425 = vmatprep.subr.mxu0 0.0
        %426 = vmatpush1.xpose.msra.mxu0 0.0
        %427 = vmatprep.subr.mxu0 0.0
        %428 = vmatpush1.xpose.msra.mxu0 0.0
        %429 = vmatprep.subr.mxu0 0.0
        %430 = vmatpush1.xpose.msra.mxu0 0.0
        %431 = vmatprep.subr.mxu0 0.0
        %432 = vmatpush1.xpose.msra.mxu0 0.0
        %433 = vmatprep.subr.mxu0 0.0
        %434 = vmatpush1.xpose.msra.mxu0 0.0
        %435 = vmatprep.subr.mxu0 0.0
        %436 = vmatpush1.xpose.msra.mxu0 0.0
        %437 = vmatprep.subr.mxu0 0.0
        %438 = vmatpush1.xpose.msra.mxu0 0.0
        %439 = vmatprep.subr.mxu0 0.0
        %440 = vmatpush1.xpose.msra.mxu0 0.0
        %441 = vmatprep.subr.mxu0 0.0
        %442 = vmatpush1.xpose.msra.mxu0 0.0
        %443 = vmatprep.subr.mxu0 0.0
        %444 = vmatpush1.xpose.msra.mxu0 0.0
        %445 = vmatprep.subr.mxu0 0.0
        %446 = vmatpush1.xpose.msra.mxu0 0.0
        %447 = vmatprep.subr.mxu0 0.0
        %448 = vmatpush1.xpose.msra.mxu0 0.0
        %449 = vmatprep.subr.mxu0 0.0
        %450 = vmatpush1.xpose.msra.mxu0 0.0
        %451 = vmatprep.subr.mxu0 0.0
        %452 = vmatpush1.xpose.msra.mxu0 0.0
        %453 = vmatprep.subr.mxu0 0.0
        %454 = vmatpush1.xpose.msra.mxu0 0.0
        %455 = vmatprep.subr.mxu0 0.0
        %456 = vmatpush1.xpose.msra.mxu0 0.0
        %457 = vmatprep.subr.mxu0 0.0
        %458 = vmatpush1.xpose.msra.mxu0 0.0
        %459 = vmatprep.subr.mxu0 0.0
        %460 = vmatpush1.xpose.msra.mxu0 0.0
        %461 = vmatprep.subr.mxu0 0.0
        %462 = vmatpush1.xpose.msra.mxu0 0.0
        %463 = vmatprep.subr.mxu0 0.0
        %464 = vmatpush1.xpose.msra.mxu0 0.0
        %465 = vmatprep.subr.mxu0 0.0
        %466 = vmatpush1.xpose.msra.mxu0 0.0
        %467 = vmatprep.subr.mxu0 0.0
        %468 = vmatpush1.xpose.msra.mxu0 0.0
        %469 = vmatprep.subr.mxu0 0.0
        %470 = vmatpush1.xpose.msra.mxu0 0.0
        %471 = vmatprep.subr.mxu0 0.0
        %472 = vmatpush1.xpose.msra.mxu0 0.0
        %473 = vmatprep.subr.mxu0 0.0
        %474 = vmatpush1.xpose.msra.mxu0 0.0
        %475 = vmatprep.subr.mxu0 0.0
        %476 = vmatpush1.xpose.msra.mxu0 0.0
        %477 = vmatprep.mubr.f32.mxu0 0.0
        %478 = vmatmul.mubr.f32.gmra.mrb[0].mxu0 %v409
        %v479 = vpop.f32.mrb[0].mxu0
        %v480 = vadd.f32 0.0, %v479
        %v481 = vpop.f32.mrb[0].mxu0
        %482 = vdwg.mxu0
        %v483 = vsel %vm325, -inf, %v480
        %484 = vrot.lane.b32.xlu0 %v318, 112
        %v485 = vpop.permute.xlu0 %484
        %486 = vrot.lane.b32.xlu0 %v318, 80
        %v487 = vpop.permute.xlu0 %486
        %v488 = vsel %vm329, %v485, 0
        %v490 = vsel %vm329, %v487, 0
        %492 = vmatprep.subr.mxu0 0.0
        %493 = vmatpush1.xpose.msra.mxu0 %v490
        %494 = vmatprep.subr.mxu0 0.0
        %495 = vmatpush1.xpose.msra.mxu0 0.0
        %496 = vmatprep.subr.mxu0 0.0
        %497 = vmatpush1.xpose.msra.mxu0 0.0
        %498 = vmatprep.subr.mxu0 0.0
        %499 = vmatpush1.xpose.msra.mxu0 0.0
        %500 = vmatprep.subr.mxu0 0.0
        %501 = vmatpush1.xpose.msra.mxu0 0.0
        %502 = vmatprep.subr.mxu0 0.0
        %503 = vmatpush1.xpose.msra.mxu0 0.0
        %504 = vmatprep.subr.mxu0 0.0
        %505 = vmatpush1.xpose.msra.mxu0 0.0
        %506 = vmatprep.subr.mxu0 0.0
        %507 = vmatpush1.xpose.msra.mxu0 0.0
        %508 = vmatprep.subr.mxu0 0.0
        %509 = vmatpush1.xpose.msra.mxu0 0.0
        %510 = vmatprep.subr.mxu0 0.0
        %511 = vmatpush1.xpose.msra.mxu0 0.0
        %512 = vmatprep.subr.mxu0 0.0
        %513 = vmatpush1.xpose.msra.mxu0 0.0
        %514 = vmatprep.subr.mxu0 0.0
        %515 = vmatpush1.xpose.msra.mxu0 0.0
        %516 = vmatprep.subr.mxu0 0.0
        %517 = vmatpush1.xpose.msra.mxu0 0.0
        %518 = vmatprep.subr.mxu0 0.0
        %519 = vmatpush1.xpose.msra.mxu0 0.0
        %520 = vmatprep.subr.mxu0 0.0
        %521 = vmatpush1.xpose.msra.mxu0 0.0
        %522 = vmatprep.subr.mxu0 0.0
        %523 = vmatpush1.xpose.msra.mxu0 0.0
        %524 = vmatprep.subr.mxu0 0.0
        %525 = vmatpush1.xpose.msra.mxu0 0.0
        %526 = vmatprep.subr.mxu0 0.0
        %527 = vmatpush1.xpose.msra.mxu0 0.0
        %528 = vmatprep.subr.mxu0 0.0
        %529 = vmatpush1.xpose.msra.mxu0 0.0
        %530 = vmatprep.subr.mxu0 0.0
        %531 = vmatpush1.xpose.msra.mxu0 0.0
        %532 = vmatprep.subr.mxu0 0.0
        %533 = vmatpush1.xpose.msra.mxu0 0.0
        %534 = vmatprep.subr.mxu0 0.0
        %535 = vmatpush1.xpose.msra.mxu0 0.0
        %536 = vmatprep.subr.mxu0 0.0
        %537 = vmatpush1.xpose.msra.mxu0 0.0
        %538 = vmatprep.subr.mxu0 0.0
        %539 = vmatpush1.xpose.msra.mxu0 0.0
        %540 = vmatprep.subr.mxu0 0.0
        %541 = vmatpush1.xpose.msra.mxu0 0.0
        %542 = vmatprep.subr.mxu0 0.0
        %543 = vmatpush1.xpose.msra.mxu0 0.0
        %544 = vmatprep.subr.mxu0 0.0
        %545 = vmatpush1.xpose.msra.mxu0 0.0
        %546 = vmatprep.subr.mxu0 0.0
        %547 = vmatpush1.xpose.msra.mxu0 0.0
        %548 = vmatprep.subr.mxu0 0.0
        %549 = vmatpush1.xpose.msra.mxu0 0.0
        %550 = vmatprep.subr.mxu0 0.0
        %551 = vmatpush1.xpose.msra.mxu0 0.0
        %552 = vmatprep.subr.mxu0 0.0
        %553 = vmatpush1.xpose.msra.mxu0 0.0
        %554 = vmatprep.subr.mxu0 0.0
        %555 = vmatpush1.xpose.msra.mxu0 0.0
        %556 = vmatprep.mubr.f32.mxu0 0.0
        %557 = vmatmul.mubr.f32.gmra.mrb[0].mxu0 %v488
        %v558 = vpop.f32.mrb[0].mxu0
        %v559 = vadd.f32 0.0, %v558
        %v560 = vpop.f32.mrb[0].mxu0
        %561 = vdwg.mxu0
        %v562 = vsel %vm325, -inf, %v559
        %563 = vrot.lane.b32.xlu0 %v318, 104
        %v564 = vpop.permute.xlu0 %563
        %565 = vrot.lane.b32.xlu0 %v318, 72
        %v566 = vpop.permute.xlu0 %565
        %v567 = vsel %vm329, %v564, 0
        %v569 = vsel %vm329, %v566, 0
        %571 = vmatprep.subr.mxu0 0.0
        %572 = vmatpush1.xpose.msra.mxu0 %v569
        %573 = vmatprep.subr.mxu0 0.0
        %574 = vmatpush1.xpose.msra.mxu0 0.0
        %575 = vmatprep.subr.mxu0 0.0
        %576 = vmatpush1.xpose.msra.mxu0 0.0
        %577 = vmatprep.subr.mxu0 0.0
        %578 = vmatpush1.xpose.msra.mxu0 0.0
        %579 = vmatprep.subr.mxu0 0.0
        %580 = vmatpush1.xpose.msra.mxu0 0.0
        %581 = vmatprep.subr.mxu0 0.0
        %582 = vmatpush1.xpose.msra.mxu0 0.0
        %583 = vmatprep.subr.mxu0 0.0
        %584 = vmatpush1.xpose.msra.mxu0 0.0
        %585 = vmatprep.subr.mxu0 0.0
        %586 = vmatpush1.xpose.msra.mxu0 0.0
        %587 = vmatprep.subr.mxu0 0.0
        %588 = vmatpush1.xpose.msra.mxu0 0.0
        %589 = vmatprep.subr.mxu0 0.0
        %590 = vmatpush1.xpose.msra.mxu0 0.0
        %591 = vmatprep.subr.mxu0 0.0
        %592 = vmatpush1.xpose.msra.mxu0 0.0
        %593 = vmatprep.subr.mxu0 0.0
        %594 = vmatpush1.xpose.msra.mxu0 0.0
        %595 = vmatprep.subr.mxu0 0.0
        %596 = vmatpush1.xpose.msra.mxu0 0.0
        %597 = vmatprep.subr.mxu0 0.0
        %598 = vmatpush1.xpose.msra.mxu0 0.0
        %599 = vmatprep.subr.mxu0 0.0
        %600 = vmatpush1.xpose.msra.mxu0 0.0
        %601 = vmatprep.subr.mxu0 0.0
        %602 = vmatpush1.xpose.msra.mxu0 0.0
        %603 = vmatprep.subr.mxu0 0.0
        %604 = vmatpush1.xpose.msra.mxu0 0.0
        %605 = vmatprep.subr.mxu0 0.0
        %606 = vmatpush1.xpose.msra.mxu0 0.0
        %607 = vmatprep.subr.mxu0 0.0
        %608 = vmatpush1.xpose.msra.mxu0 0.0
        %609 = vmatprep.subr.mxu0 0.0
        %610 = vmatpush1.xpose.msra.mxu0 0.0
        %611 = vmatprep.subr.mxu0 0.0
        %612 = vmatpush1.xpose.msra.mxu0 0.0
        %613 = vmatprep.subr.mxu0 0.0
        %614 = vmatpush1.xpose.msra.mxu0 0.0
        %615 = vmatprep.subr.mxu0 0.0
        %616 = vmatpush1.xpose.msra.mxu0 0.0
        %617 = vmatprep.subr.mxu0 0.0
        %618 = vmatpush1.xpose.msra.mxu0 0.0
        %619 = vmatprep.subr.mxu0 0.0
        %620 = vmatpush1.xpose.msra.mxu0 0.0
        %621 = vmatprep.subr.mxu0 0.0
        %622 = vmatpush1.xpose.msra.mxu0 0.0
        %623 = vmatprep.subr.mxu0 0.0
        %624 = vmatpush1.xpose.msra.mxu0 0.0
        %625 = vmatprep.subr.mxu0 0.0
        %626 = vmatpush1.xpose.msra.mxu0 0.0
        %627 = vmatprep.subr.mxu0 0.0
        %628 = vmatpush1.xpose.msra.mxu0 0.0
        %629 = vmatprep.subr.mxu0 0.0
        %630 = vmatpush1.xpose.msra.mxu0 0.0
        %631 = vmatprep.subr.mxu0 0.0
        %632 = vmatpush1.xpose.msra.mxu0 0.0
        %633 = vmatprep.subr.mxu0 0.0
        %634 = vmatpush1.xpose.msra.mxu0 0.0
        %635 = vmatprep.mubr.f32.mxu0 0.0
        %636 = vmatmul.mubr.f32.gmra.mrb[0].mxu0 %v567
        %v637 = vpop.f32.mrb[0].mxu0
        %v638 = vadd.f32 0.0, %v637
        %v639 = vpop.f32.mrb[0].mxu0
        %640 = vdwg.mxu0
        %v641 = vsel %vm325, -inf, %v638
        %v642 = vmax.f32 %v404, %v483
        %v643 = vmax.f32 %v642, %v562
        %v644 = vmax.f32 %v643, %v641
        %v645 = vsub.f32 %v404, %v644
        %v646 = vmul.f32 %v645, 1.442695
        %v647 = vpow.pop %v646
        %v648 = vsub.f32 %v483, %v644
        %v649 = vmul.f32 %v648, 1.442695
        %v650 = vpow.pop %v649
        %v651 = vsub.f32 %v562, %v644
        %v652 = vmul.f32 %v651, 1.442695
        %v653 = vpow.pop %v652
        %v654 = vsub.f32 %v641, %v644
        %v655 = vmul.f32 %v654, 1.442695
        %v656 = vpow.pop %v655
        %v657 = vadd.f32 %v647, %v650
        %v658 = vadd.f32 %v657, %v653
        %v659 = vadd.f32 %v658, %v656
        %v660 = vrcp.pop %v659
        %v661 = vmul.f32 %v647, %v660
        %662 = vrot.lane.b32.xlu0 %v318, 64
        %v663 = vpop.permute.xlu0 %662
        %v666 = vsel %vm329, %v661, 0
        %668 = vmatprep.subr.mxu0 0.0
        %669 = vmatpush1.msra.mxu0 %v663
        %670 = vmatprep.subr.mxu0 0.0
        %671 = vmatpush1.msra.mxu0 0.0
        %672 = vmatprep.subr.mxu0 0.0
        %673 = vmatpush1.msra.mxu0 0.0
        %674 = vmatprep.subr.mxu0 0.0
        %675 = vmatpush1.msra.mxu0 0.0
        %676 = vmatprep.subr.mxu0 0.0
        %677 = vmatpush1.msra.mxu0 0.0
        %678 = vmatprep.subr.mxu0 0.0
        %679 = vmatpush1.msra.mxu0 0.0
        %680 = vmatprep.subr.mxu0 0.0
        %681 = vmatpush1.msra.mxu0 0.0
        %682 = vmatprep.subr.mxu0 0.0
        %683 = vmatpush1.msra.mxu0 0.0
        %684 = vmatprep.subr.mxu0 0.0
        %685 = vmatpush1.msra.mxu0 0.0
        %686 = vmatprep.subr.mxu0 0.0
        %687 = vmatpush1.msra.mxu0 0.0
        %688 = vmatprep.subr.mxu0 0.0
        %689 = vmatpush1.msra.mxu0 0.0
        %690 = vmatprep.subr.mxu0 0.0
        %691 = vmatpush1.msra.mxu0 0.0
        %692 = vmatprep.subr.mxu0 0.0
        %693 = vmatpush1.msra.mxu0 0.0
        %694 = vmatprep.subr.mxu0 0.0
        %695 = vmatpush1.msra.mxu0 0.0
        %696 = vmatprep.subr.mxu0 0.0
        %697 = vmatpush1.msra.mxu0 0.0
        %698 = vmatprep.subr.mxu0 0.0
        %699 = vmatpush1.msra.mxu0 0.0
        %700 = vmatprep.subr.mxu0 0.0
        %701 = vmatpush1.msra.mxu0 0.0
        %702 = vmatprep.subr.mxu0 0.0
        %703 = vmatpush1.msra.mxu0 0.0
        %704 = vmatprep.subr.mxu0 0.0
        %705 = vmatpush1.msra.mxu0 0.0
        %706 = vmatprep.subr.mxu0 0.0
        %707 = vmatpush1.msra.mxu0 0.0
        %708 = vmatprep.subr.mxu0 0.0
        %709 = vmatpush1.msra.mxu0 0.0
        %710 = vmatprep.subr.mxu0 0.0
        %711 = vmatpush1.msra.mxu0 0.0
        %712 = vmatprep.subr.mxu0 0.0
        %713 = vmatpush1.msra.mxu0 0.0
        %714 = vmatprep.subr.mxu0 0.0
        %715 = vmatpush1.msra.mxu0 0.0
        %716 = vmatprep.subr.mxu0 0.0
        %717 = vmatpush1.msra.mxu0 0.0
        %718 = vmatprep.subr.mxu0 0.0
        %719 = vmatpush1.msra.mxu0 0.0
        %720 = vmatprep.subr.mxu0 0.0
        %721 = vmatpush1.msra.mxu0 0.0
        %722 = vmatprep.subr.mxu0 0.0
        %723 = vmatpush1.msra.mxu0 0.0
        %724 = vmatprep.subr.mxu0 0.0
        %725 = vmatpush1.msra.mxu0 0.0
        %726 = vmatprep.subr.mxu0 0.0
        %727 = vmatpush1.msra.mxu0 0.0
        %728 = vmatprep.subr.mxu0 0.0
        %729 = vmatpush1.msra.mxu0 0.0
        %730 = vmatprep.subr.mxu0 0.0
        %731 = vmatpush1.msra.mxu0 0.0
        %732 = vmatprep.mubr.f32.mxu0 0.0
        %733 = vmatmul.mubr.f32.gmra.mrb[0].mxu0 %v666
        %v734 = vpop.f32.mrb[0].mxu0
        %v735 = vadd.f32 0.0, %v734
        %v736 = vpop.f32.mrb[0].mxu0
        %737 = vdwg.mxu0
        %v738 = vmul.f32 %v650, %v660
        %739 = vrot.lane.b32.xlu0 %v318, 56
        %v740 = vpop.permute.xlu0 %739
        %v743 = vsel %vm329, %v738, 0
        %745 = vmatprep.subr.mxu0 0.0
        %746 = vmatpush1.msra.mxu0 %v740
        %747 = vmatprep.subr.mxu0 0.0
        %748 = vmatpush1.msra.mxu0 0.0
        %749 = vmatprep.subr.mxu0 0.0
        %750 = vmatpush1.msra.mxu0 0.0
        %751 = vmatprep.subr.mxu0 0.0
        %752 = vmatpush1.msra.mxu0 0.0
        %753 = vmatprep.subr.mxu0 0.0
        %754 = vmatpush1.msra.mxu0 0.0
        %755 = vmatprep.subr.mxu0 0.0
        %756 = vmatpush1.msra.mxu0 0.0
        %757 = vmatprep.subr.mxu0 0.0
        %758 = vmatpush1.msra.mxu0 0.0
        %759 = vmatprep.subr.mxu0 0.0
        %760 = vmatpush1.msra.mxu0 0.0
        %761 = vmatprep.subr.mxu0 0.0
        %762 = vmatpush1.msra.mxu0 0.0
        %763 = vmatprep.subr.mxu0 0.0
        %764 = vmatpush1.msra.mxu0 0.0
        %765 = vmatprep.subr.mxu0 0.0
        %766 = vmatpush1.msra.mxu0 0.0
        %767 = vmatprep.subr.mxu0 0.0
        %768 = vmatpush1.msra.mxu0 0.0
        %769 = vmatprep.subr.mxu0 0.0
        %770 = vmatpush1.msra.mxu0 0.0
        %771 = vmatprep.subr.mxu0 0.0
        %772 = vmatpush1.msra.mxu0 0.0
        %773 = vmatprep.subr.mxu0 0.0
        %774 = vmatpush1.msra.mxu0 0.0
        %775 = vmatprep.subr.mxu0 0.0
        %776 = vmatpush1.msra.mxu0 0.0
        %777 = vmatprep.subr.mxu0 0.0
        %778 = vmatpush1.msra.mxu0 0.0
        %779 = vmatprep.subr.mxu0 0.0
        %780 = vmatpush1.msra.mxu0 0.0
        %781 = vmatprep.subr.mxu0 0.0
        %782 = vmatpush1.msra.mxu0 0.0
        %783 = vmatprep.subr.mxu0 0.0
        %784 = vmatpush1.msra.mxu0 0.0
        %785 = vmatprep.subr.mxu0 0.0
        %786 = vmatpush1.msra.mxu0 0.0
        %787 = vmatprep.subr.mxu0 0.0
        %788 = vmatpush1.msra.mxu0 0.0
        %789 = vmatprep.subr.mxu0 0.0
        %790 = vmatpush1.msra.mxu0 0.0
        %791 = vmatprep.subr.mxu0 0.0
        %792 = vmatpush1.msra.mxu0 0.0
        %793 = vmatprep.subr.mxu0 0.0
        %794 = vmatpush1.msra.mxu0 0.0
        %795 = vmatprep.subr.mxu0 0.0
        %796 = vmatpush1.msra.mxu0 0.0
        %797 = vmatprep.subr.mxu0 0.0
        %798 = vmatpush1.msra.mxu0 0.0
        %799 = vmatprep.subr.mxu0 0.0
        %800 = vmatpush1.msra.mxu0 0.0
        %801 = vmatprep.subr.mxu0 0.0
        %802 = vmatpush1.msra.mxu0 0.0
        %803 = vmatprep.subr.mxu0 0.0
        %804 = vmatpush1.msra.mxu0 0.0
        %805 = vmatprep.subr.mxu0 0.0
        %806 = vmatpush1.msra.mxu0 0.0
        %807 = vmatprep.subr.mxu0 0.0
        %808 = vmatpush1.msra.mxu0 0.0
        %809 = vmatprep.mubr.f32.mxu0 0.0
        %810 = vmatmul.mubr.f32.gmra.mrb[0].mxu0 %v743
        %v811 = vpop.f32.mrb[0].mxu0
        %v812 = vadd.f32 0.0, %v811
        %v813 = vpop.f32.mrb[0].mxu0
        %814 = vdwg.mxu0
        %v815 = vmul.f32 %v653, %v660
        %816 = vrot.lane.b32.xlu0 %v318, 48
        %v817 = vpop.permute.xlu0 %816
        %v820 = vsel %vm329, %v815, 0
        %822 = vmatprep.subr.mxu0 0.0
        %823 = vmatpush1.msra.mxu0 %v817
        %824 = vmatprep.subr.mxu0 0.0
        %825 = vmatpush1.msra.mxu0 0.0
        %826 = vmatprep.subr.mxu0 0.0
        %827 = vmatpush1.msra.mxu0 0.0
        %828 = vmatprep.subr.mxu0 0.0
        %829 = vmatpush1.msra.mxu0 0.0
        %830 = vmatprep.subr.mxu0 0.0
        %831 = vmatpush1.msra.mxu0 0.0
        %832 = vmatprep.subr.mxu0 0.0
        %833 = vmatpush1.msra.mxu0 0.0
        %834 = vmatprep.subr.mxu0 0.0
        %835 = vmatpush1.msra.mxu0 0.0
        %836 = vmatprep.subr.mxu0 0.0
        %837 = vmatpush1.msra.mxu0 0.0
        %838 = vmatprep.subr.mxu0 0.0
        %839 = vmatpush1.msra.mxu0 0.0
        %840 = vmatprep.subr.mxu0 0.0
        %841 = vmatpush1.msra.mxu0 0.0
        %842 = vmatprep.subr.mxu0 0.0
        %843 = vmatpush1.msra.mxu0 0.0
        %844 = vmatprep.subr.mxu0 0.0
        %845 = vmatpush1.msra.mxu0 0.0
        %846 = vmatprep.subr.mxu0 0.0
        %847 = vmatpush1.msra.mxu0 0.0
        %848 = vmatprep.subr.mxu0 0.0
        %849 = vmatpush1.msra.mxu0 0.0
        %850 = vmatprep.subr.mxu0 0.0
        %851 = vmatpush1.msra.mxu0 0.0
        %852 = vmatprep.subr.mxu0 0.0
        %853 = vmatpush1.msra.mxu0 0.0
        %854 = vmatprep.subr.mxu0 0.0
        %855 = vmatpush1.msra.mxu0 0.0
        %856 = vmatprep.subr.mxu0 0.0
        %857 = vmatpush1.msra.mxu0 0.0
        %858 = vmatprep.subr.mxu0 0.0
        %859 = vmatpush1.msra.mxu0 0.0
        %860 = vmatprep.subr.mxu0 0.0
        %861 = vmatpush1.msra.mxu0 0.0
        %862 = vmatprep.subr.mxu0 0.0
        %863 = vmatpush1.msra.mxu0 0.0
        %864 = vmatprep.subr.mxu0 0.0
        %865 = vmatpush1.msra.mxu0 0.0
        %866 = vmatprep.subr.mxu0 0.0
        %867 = vmatpush1.msra.mxu0 0.0
        %868 = vmatprep.subr.mxu0 0.0
        %869 = vmatpush1.msra.mxu0 0.0
        %870 = vmatprep.subr.mxu0 0.0
        %871 = vmatpush1.msra.mxu0 0.0
        %872 = vmatprep.subr.mxu0 0.0
        %873 = vmatpush1.msra.mxu0 0.0
        %874 = vmatprep.subr.mxu0 0.0
        %875 = vmatpush1.msra.mxu0 0.0
        %876 = vmatprep.subr.mxu0 0.0
        %877 = vmatpush1.msra.mxu0 0.0
        %878 = vmatprep.subr.mxu0 0.0
        %879 = vmatpush1.msra.mxu0 0.0
        %880 = vmatprep.subr.mxu0 0.0
        %881 = vmatpush1.msra.mxu0 0.0
        %882 = vmatprep.subr.mxu0 0.0
        %883 = vmatpush1.msra.mxu0 0.0
        %884 = vmatprep.subr.mxu0 0.0
        %885 = vmatpush1.msra.mxu0 0.0
        %886 = vmatprep.mubr.f32.mxu0 0.0
        %887 = vmatmul.mubr.f32.gmra.mrb[0].mxu0 %v820
        %v888 = vpop.f32.mrb[0].mxu0
        %v889 = vadd.f32 0.0, %v888
        %v890 = vpop.f32.mrb[0].mxu0
        %891 = vdwg.mxu0
        %v892 = vmul.f32 %v656, %v660
        %893 = vrot.lane.b32.xlu0 %v318, 40
        %v894 = vpop.permute.xlu0 %893
        %v897 = vsel %vm329, %v892, 0
        %899 = vmatprep.subr.mxu0 0.0
        %900 = vmatpush1.msra.mxu0 %v894
        %901 = vmatprep.subr.mxu0 0.0
        %902 = vmatpush1.msra.mxu0 0.0
        %903 = vmatprep.subr.mxu0 0.0
        %904 = vmatpush1.msra.mxu0 0.0
        %905 = vmatprep.subr.mxu0 0.0
        %906 = vmatpush1.msra.mxu0 0.0
        %907 = vmatprep.subr.mxu0 0.0
        %908 = vmatpush1.msra.mxu0 0.0
        %909 = vmatprep.subr.mxu0 0.0
        %910 = vmatpush1.msra.mxu0 0.0
        %911 = vmatprep.subr.mxu0 0.0
        %912 = vmatpush1.msra.mxu0 0.0
        %913 = vmatprep.subr.mxu0 0.0
        %914 = vmatpush1.msra.mxu0 0.0
        %915 = vmatprep.subr.mxu0 0.0
        %916 = vmatpush1.msra.mxu0 0.0
        %917 = vmatprep.subr.mxu0 0.0
        %918 = vmatpush1.msra.mxu0 0.0
        %919 = vmatprep.subr.mxu0 0.0
        %920 = vmatpush1.msra.mxu0 0.0
        %921 = vmatprep.subr.mxu0 0.0
        %922 = vmatpush1.msra.mxu0 0.0
        %923 = vmatprep.subr.mxu0 0.0
        %924 = vmatpush1.msra.mxu0 0.0
        %925 = vmatprep.subr.mxu0 0.0
        %926 = vmatpush1.msra.mxu0 0.0
        %927 = vmatprep.subr.mxu0 0.0
        %928 = vmatpush1.msra.mxu0 0.0
        %929 = vmatprep.subr.mxu0 0.0
        %930 = vmatpush1.msra.mxu0 0.0
        %931 = vmatprep.subr.mxu0 0.0
        %932 = vmatpush1.msra.mxu0 0.0
        %933 = vmatprep.subr.mxu0 0.0
        %934 = vmatpush1.msra.mxu0 0.0
        %935 = vmatprep.subr.mxu0 0.0
        %936 = vmatpush1.msra.mxu0 0.0
        %937 = vmatprep.subr.mxu0 0.0
        %938 = vmatpush1.msra.mxu0 0.0
        %939 = vmatprep.subr.mxu0 0.0
        %940 = vmatpush1.msra.mxu0 0.0
        %941 = vmatprep.subr.mxu0 0.0
        %942 = vmatpush1.msra.mxu0 0.0
        %943 = vmatprep.subr.mxu0 0.0
        %944 = vmatpush1.msra.mxu0 0.0
        %945 = vmatprep.subr.mxu0 0.0
        %946 = vmatpush1.msra.mxu0 0.0
        %947 = vmatprep.subr.mxu0 0.0
        %948 = vmatpush1.msra.mxu0 0.0
        %949 = vmatprep.subr.mxu0 0.0
        %950 = vmatpush1.msra.mxu0 0.0
        %951 = vmatprep.subr.mxu0 0.0
        %952 = vmatpush1.msra.mxu0 0.0
        %953 = vmatprep.subr.mxu0 0.0
        %954 = vmatpush1.msra.mxu0 0.0
        %955 = vmatprep.subr.mxu0 0.0
        %956 = vmatpush1.msra.mxu0 0.0
        %957 = vmatprep.subr.mxu0 0.0
        %958 = vmatpush1.msra.mxu0 0.0
        %959 = vmatprep.subr.mxu0 0.0
        %960 = vmatpush1.msra.mxu0 0.0
        %961 = vmatprep.subr.mxu0 0.0
        %962 = vmatpush1.msra.mxu0 0.0
        %963 = vmatprep.mubr.f32.mxu0 0.0
        %964 = vmatmul.mubr.f32.gmra.mrb[0].mxu0 %v897
        %v965 = vpop.f32.mrb[0].mxu0
        %v966 = vadd.f32 0.0, %v965
        %v967 = vpop.f32.mrb[0].mxu0
        %968 = vdwg.mxu0
        %970 = vrot.lane.b32.xlu0 %v812, 8
        %v971 = vpop.permute.xlu0 %970
        %974 = vrot.lane.b32.xlu0 %v889, 16
        %v975 = vpop.permute.xlu0 %974
        %978 = vrot.lane.b32.xlu0 %v966, 24
        %v979 = vpop.permute.xlu0 %978
        %v981 = vsel %vm329, %v735, %v971
        %vm982 = vcmask 130048
        %v983 = vsel %vm982, %v981, %v975
        %vm984 = vcmask 195584
        %v985 = vsel %vm984, %v983, %v979
        %v986 = vld [vmem:[#allocation7] sm:$0xff]
        %v987 = vld [vmem:[#allocation7 + $0x8] sm:$0xff]
        %v988 = vld [vmem:[#allocation7 + $0x10] sm:$0xff]
        %v989 = vld [vmem:[#allocation7 + $0x18] sm:$0xff]
        %v990 = vld [vmem:[%s3] sm:$0x1]
        %v992 = vlaneseq
        %v993 = vshrl.u32 %v992, 7
        %v994 = vsub.s32 0, %v993
        %v995 = vrot.slane %v990, %v994
        %v998 = vsel %vm247, %v985, 0
        %1000 = vmatprep.subr.mxu0 0.0
        %1001 = vmatpush1.msra.mxu0 %v986
        %1002 = vmatprep.subr.mxu0 0.0
        %1003 = vmatpush1.msra.mxu0 %v987
        %1004 = vmatprep.subr.mxu0 0.0
        %1005 = vmatpush1.msra.mxu0 %v988
        %1006 = vmatprep.subr.mxu0 0.0
        %1007 = vmatpush1.msra.mxu0 %v989
        %1008 = vmatprep.subr.mxu0 0.0
        %1009 = vmatpush1.msra.mxu0 0.0
        %1010 = vmatprep.subr.mxu0 0.0
        %1011 = vmatpush1.msra.mxu0 0.0
        %1012 = vmatprep.subr.mxu0 0.0
        %1013 = vmatpush1.msra.mxu0 0.0
        %1014 = vmatprep.subr.mxu0 0.0
        %1015 = vmatpush1.msra.mxu0 0.0
        %1016 = vmatprep.subr.mxu0 0.0
        %1017 = vmatpush1.msra.mxu0 0.0
        %1018 = vmatprep.subr.mxu0 0.0
        %1019 = vmatpush1.msra.mxu0 0.0
        %1020 = vmatprep.subr.mxu0 0.0
        %1021 = vmatpush1.msra.mxu0 0.0
        %1022 = vmatprep.subr.mxu0 0.0
        %1023 = vmatpush1.msra.mxu0 0.0
        %1024 = vmatprep.subr.mxu0 0.0
        %1025 = vmatpush1.msra.mxu0 0.0
        %1026 = vmatprep.subr.mxu0 0.0
        %1027 = vmatpush1.msra.mxu0 0.0
        %1028 = vmatprep.subr.mxu0 0.0
        %1029 = vmatpush1.msra.mxu0 0.0
        %1030 = vmatprep.subr.mxu0 0.0
        %1031 = vmatpush1.msra.mxu0 0.0
        %1032 = vmatprep.subr.mxu0 0.0
        %1033 = vmatpush1.msra.mxu0 0.0
        %1034 = vmatprep.subr.mxu0 0.0
        %1035 = vmatpush1.msra.mxu0 0.0
        %1036 = vmatprep.subr.mxu0 0.0
        %1037 = vmatpush1.msra.mxu0 0.0
        %1038 = vmatprep.subr.mxu0 0.0
        %1039 = vmatpush1.msra.mxu0 0.0
        %1040 = vmatprep.subr.mxu0 0.0
        %1041 = vmatpush1.msra.mxu0 0.0
        %1042 = vmatprep.subr.mxu0 0.0
        %1043 = vmatpush1.msra.mxu0 0.0
        %1044 = vmatprep.subr.mxu0 0.0
        %1045 = vmatpush1.msra.mxu0 0.0
        %1046 = vmatprep.subr.mxu0 0.0
        %1047 = vmatpush1.msra.mxu0 0.0
        %1048 = vmatprep.subr.mxu0 0.0
        %1049 = vmatpush1.msra.mxu0 0.0
        %1050 = vmatprep.subr.mxu0 0.0
        %1051 = vmatpush1.msra.mxu0 0.0
        %1052 = vmatprep.subr.mxu0 0.0
        %1053 = vmatpush1.msra.mxu0 0.0
        %1054 = vmatprep.subr.mxu0 0.0
        %1055 = vmatpush1.msra.mxu0 0.0
        %1056 = vmatprep.subr.mxu0 0.0
        %1057 = vmatpush1.msra.mxu0 0.0
        %1058 = vmatprep.subr.mxu0 0.0
        %1059 = vmatpush1.msra.mxu0 0.0
        %1060 = vmatprep.subr.mxu0 0.0
        %1061 = vmatpush1.msra.mxu0 0.0
        %1062 = vmatprep.subr.mxu0 0.0
        %1063 = vmatpush1.msra.mxu0 0.0
        %1064 = vmatprep.mubr.f32.mxu0 0.0
        %1065 = vmatmul.mubr.f32.gmra.mrb[0].mxu0 %v998
        %v1066 = vpop.f32.mrb[0].mxu0
        %v1067 = vadd.f32 %v995, %v1066
        %v1068 = vpop.f32.mrb[0].mxu0
        %1069 = vdwg.mxu0
        %1070 = vst.msk [vmem:[%s241] sm:$0xff] %vm247, %v1067
        %s1071 = sand.u32 %s119, 1
        %s1072 = scalar_lea.sflag [#allocation4], %s1071
        %s1073 = sand.u32 %s119, 1
        %s1074 = smul.addr %s1073, 8
        %s1075 = scalar_lea.vmem [#allocation8], %s1074
        // Predicated region
        $region49: #{tpu_custom_call.1} parent=35 // pred_check
          %p1076 = pneg %p129
        $region50: #{tpu_custom_call.1} parent=35 // pred_check_branch
          %1078 = sbr.rel (%p1076) target = $region52
        $region51: #{tpu_custom_call.1} parent=35 // pred_region
          %s1080 = ssub.s32 128, 128
          %1081 = vsyncadd %s1072, %s1080
          %s1082 = smul.addr %s22, 128
          %s1083 = scalar_lea.hbm %s4, %s1082
          %s1085 = sshll.u32 %s1075, 4
          %s1086 = int_to_ptr.vmem [resolvable:$true] %s1085
          %1088 = dma.vmem_to_hbm [thread:$0]  %s1086, 128, %s1083, %s1072
        $region52: #{tpu_custom_call.1} parent=35 // pred_fallthru
          _
      $region36: #{tpu_custom_call.1} parent=5 // pred_fallthru
        _
      %p1089 = scmp.le.s32.totalorder 2, %s17
      // Predicated region
      $region53: #{tpu_custom_call.1} parent=5 // pred_check
        %p1090 = pneg %p1089
      $region54: #{tpu_custom_call.1} parent=5 // pred_check_branch
        %1092 = sbr.rel (%p1090) target = $region56
      $region55: #{tpu_custom_call.1} parent=5 // pred_region
        %s1093 = ssub.s32 %s17, 2
        // Predicated region
        $region57: #{tpu_custom_call.1} parent=55 // pred_check
          %p1094 = pneg %p135
        $region58: #{tpu_custom_call.1} parent=55 // pred_check_branch
          %1096 = sbr.rel (%p1094) target = $region60
        $region59: #{tpu_custom_call.1} parent=55 // pred_region
          %s1097 = sand.u32 %s120, 1
          %s1098 = scalar_lea.sflag [#allocation4], %s1097
          %s1099 = sand.u32 %s120, 1
          %s1100 = smul.addr %s1099, 8
          %s1101 = scalar_lea.vmem [#allocation8], %s1100
          %1102 = dma.done %s1098, 128
        $region60: #{tpu_custom_call.1} parent=55 // pred_fallthru
          _
      $region56: #{tpu_custom_call.1} parent=5 // pred_fallthru
        _
    $region6: #{tpu_custom_call.1} parent=1 // loop_footer
      %s21 = sadd.s32 1, %s17
    $region7: #{tpu_custom_call.1} parent=1 // loop_footer_branch
      %16 = sbr.rel target = $region3
    $region8: #{tpu_custom_call.1} parent=1 // loop_exit
      _
    %1103 = vsyncpa [#allocation3], 1
    %s1104 = scalar_lea.sflag [#allocation3], 1
    %1105 = vsyncpa %s1104, 1
    %1106 = vsyncpa [#allocation6], 1
    %1107 = vsyncpa [#allocation4], 1
    %s1108 = scalar_lea.sflag [#allocation4], 1
    %1109 = vsyncpa %s1108, 1

</llo_original>
